<compile_context>
chip_gen: v7x
topology: tpu7x:2x2x1
jax: 0.10.0
libtpu: 0.0.40
codegen_flags: <defaults>
</compile_context>

<pallas_src>
import functools

import jax
import jax.numpy as jnp
from jax.experimental import pallas as pl
from jax.experimental.pallas import tpu as pltpu


# ----------------------------- Pallas kernel -------------------------------

def _integrator_kernel(x_ref, g_ref, w_ref, b_ref, o_ref, *, c_x, c_out, activ):
    """Fused 1x1 ConvBlock + channel-concat on one (batch, spatial-tile) block.

    x_ref: (1, TM, Cx)        passthrough half of the concat
    g_ref: (1, TM, Ci)        'integrated' input tile (spatial flattened)
    w_ref: (Ci, Co)           1x1 conv weight (channels-last layout)
    b_ref: (1, Co)            bias
    o_ref: (1, TM, Cx + Co)   concatenated output tile
    """
    g = g_ref[0]                                   # (TM, Ci)
    if activ == "relu":                            # pre-activation ConvBlock
        g = jnp.maximum(g, 0.0)
    # TODO(synk): norm='in' ConvBlock variant (unused by Integrator defaults)
    # would need whole-spatial statistics, i.e. TM == H*W.

    # One MXU matmul with M = TM rows (instead of per-row M=W dots).
    y = jnp.dot(g, w_ref[...], preferred_element_type=jnp.float32) + b_ref[...]

    # Fused torch.cat([x, out], dim=1): two lane-aligned, lane-dense stores.
    o_ref[0, :, 0:c_x] = x_ref[0]
    o_ref[0, :, c_x:c_x + c_out] = y.astype(o_ref.dtype)


# ----------------------------- wrapper --------------------------------------

def _pick_tm(hw, max_tm=512):
    """Largest spatial row-tile <= max_tm that divides H*W (multiple of 8)."""
    if hw <= max_tm:
        return hw
    for tm in range(max_tm - (max_tm % 8), 7, -8):
        if hw % tm == 0:
            return tm
    return hw  # fall back to a full (untiled) spatial block


def integrator(x, integrated, w, b, *, activ="none", max_block_m=512):
    """MX-Font Integrator.forward.

    x:          (B, Cx, H, W)   NCHW, passed through to the first Cx channels
    integrated: (B, Ci, H, W)   NCHW, goes through the 1x1 ConvBlock
    w:          (Ci, Co)        1x1 conv weight, channels-last
    b:          (Co,)           conv bias
    returns     (B, Cx+Co, H, W)
    """
    B, Cx, H, W = x.shape
    _, Ci, _, _ = integrated.shape
    Co = w.shape[1]
    HW = H * W

    # NCHW -> (B, H*W, C): channels land on lanes, spatial rows on sublanes.
    x_f = jnp.transpose(x, (0, 2, 3, 1)).reshape(B, HW, Cx)
    g_f = jnp.transpose(integrated, (0, 2, 3, 1)).reshape(B, HW, Ci)

    tm = _pick_tm(HW, max_block_m)
    grid = (B, HW // tm)

    out = pl.pallas_call(
        functools.partial(_integrator_kernel, c_x=Cx, c_out=Co, activ=activ),
        out_shape=jax.ShapeDtypeStruct((B, HW, Cx + Co), x.dtype),
        grid=grid,
        in_specs=[
            pl.BlockSpec((1, tm, Cx), lambda bb, mm: (bb, mm, 0)),
            pl.BlockSpec((1, tm, Ci), lambda bb, mm: (bb, mm, 0)),
            pl.BlockSpec((Ci, Co), lambda bb, mm: (0, 0)),   # resident weight
            pl.BlockSpec((1, Co), lambda bb, mm: (0, 0)),    # resident bias
        ],
        out_specs=pl.BlockSpec((1, tm, Cx + Co), lambda bb, mm: (bb, mm, 0)),
        compiler_params=pltpu.CompilerParams(
            dimension_semantics=("parallel", "parallel")),
    )(x_f, g_f, w, b.reshape(1, Co))

    return jnp.transpose(out.reshape(B, H, W, Cx + Co), (0, 3, 1, 2))


# ----------------------------- main ------------------------------------------

if __name__ == "__main__":
    # Shapes matching the Decoder's use of Integrator with C=32, n_experts=2:
    #   x:          (B, 4C,   2H, 2W) = (2, 128, 8, 8)
    #   integrated: (B, 4C*k, 2H, 2W) = (2, 256, 8, 8)
    C, k = 32, 2
    B, H, W = 2, 8, 8
    Cx, Ci, Co = 4 * C, 4 * C * k, 4 * C

    key = jax.random.PRNGKey(0)
    kx, kg, kw, kb = jax.random.split(key, 4)
    x = jax.random.normal(kx, (B, Cx, H, W), jnp.float32)
    integrated = jax.random.normal(kg, (B, Ci, H, W), jnp.float32)
    w = jax.random.normal(kw, (Ci, Co), jnp.float32) / jnp.sqrt(Ci)
    b = 0.01 * jax.random.normal(kb, (Co,), jnp.float32)

    out = jax.jit(integrator)(x, integrated, w, b)
    out = jax.block_until_ready(out)

    # Pure-JAX reference: 1x1 conv (norm/activ='none') + concat along channels.
    ref_conv = jnp.einsum("bchw,cd->bdhw", integrated, w) + b[None, :, None, None]
    ref = jnp.concatenate([x, ref_conv], axis=1)

    assert out.shape == (B, Cx + Co, H, W), out.shape
    assert bool(jnp.all(jnp.isfinite(out)))
    assert bool(jnp.allclose(out, ref, atol=2e-3, rtol=2e-3))
    print("KERNEL_OK")
</pallas_src>

<mosaic_0001>
module attributes {stable_mosaic.version = 11 : i64} {
  func.func @_integrator_kernel(%arg0: i32, %arg1: i32, %arg2: memref<1x64x128xf32, #tpu.memory_space<vmem>>, %arg3: memref<1x64x256xf32, #tpu.memory_space<vmem>>, %arg4: memref<256x128xf32, #tpu.memory_space<vmem>>, %arg5: memref<1x128xf32, #tpu.memory_space<vmem>>, %arg6: memref<1x64x256xf32, #tpu.memory_space<vmem>>) attributes {dimension_semantics = [#tpu.dimension_semantics<parallel>, #tpu.dimension_semantics<parallel>], iteration_bounds = array<i64: 2, 1>, scalar_prefetch = 0 : i64, scratch_operands = 0 : i64, tpu.core_type = #tpu.core_type<tc>, window_params = [{transform_indices = @transform_0, window_bounds = array<i64: 1, 64, 128>}, {transform_indices = @transform_1, window_bounds = array<i64: 1, 64, 256>}, {pipeline_mode = #tpu.pipeline_mode<synchronous>, transform_indices = @transform_2, window_bounds = array<i64: 256, 128>}, {pipeline_mode = #tpu.pipeline_mode<synchronous>, transform_indices = @transform_3, window_bounds = array<i64: 1, 128>}, {transform_indices = @transform_4, window_bounds = array<i64: 1, 64, 256>}]} {
    %c0 = arith.constant 0 : index
    %c0_0 = arith.constant 0 : index
    %c0_1 = arith.constant 0 : index
    %0 = vector.load %arg3[%c0, %c0_0, %c0_1] : memref<1x64x256xf32, #tpu.memory_space<vmem>>, vector<1x64x256xf32>
    %1 = vector.shape_cast %0 : vector<1x64x256xf32> to vector<64x256xf32>
    %c0_2 = arith.constant 0 : index
    %c0_3 = arith.constant 0 : index
    %2 = vector.load %arg4[%c0_2, %c0_3] : memref<256x128xf32, #tpu.memory_space<vmem>>, vector<256x128xf32>
    %cst = arith.constant dense<0.000000e+00> : vector<64x128xf32>
    %3 = tpu.matmul %1, %2, %cst {dimension_numbers = #tpu.dot_dimension_numbers<[1], [0], [0], [1], [0, 0, 1, 1], [], []>} : vector<64x256xf32>, vector<256x128xf32>, vector<64x128xf32> -> vector<64x128xf32>
    %c0_4 = arith.constant 0 : index
    %c0_5 = arith.constant 0 : index
    %4 = vector.load %arg5[%c0_4, %c0_5] : memref<1x128xf32, #tpu.memory_space<vmem>>, vector<1x128xf32>
    %5 = vector.broadcast %4 : vector<1x128xf32> to vector<64x128xf32>
    %6 = arith.addf %3, %5 : vector<64x128xf32>
    %c0_6 = arith.constant 0 : index
    %c0_7 = arith.constant 0 : index
    %c0_8 = arith.constant 0 : index
    %7 = vector.load %arg2[%c0_6, %c0_7, %c0_8] : memref<1x64x128xf32, #tpu.memory_space<vmem>>, vector<1x64x128xf32>
    %8 = vector.shape_cast %7 : vector<1x64x128xf32> to vector<64x128xf32>
    %c0_9 = arith.constant 0 : index
    %c0_10 = arith.constant 0 : index
    %c0_11 = arith.constant 0 : index
    %9 = vector.load %arg6[%c0_9, %c0_10, %c0_11] : memref<1x64x256xf32, #tpu.memory_space<vmem>>, vector<1x64x128xf32>
    %10 = vector.shape_cast %9 : vector<1x64x128xf32> to vector<64x128xf32>
    %11 = vector.shape_cast %8 : vector<64x128xf32> to vector<1x64x128xf32>
    tpu.vector_store %arg6[%c0_9, %c0_10, %c0_11], %11 {strides = array<i32>} : memref<1x64x256xf32, #tpu.memory_space<vmem>>, vector<1x64x128xf32>,
    %c0_12 = arith.constant 0 : index
    %c0_13 = arith.constant 0 : index
    %c128 = arith.constant 128 : index
    %12 = vector.load %arg6[%c0_12, %c0_13, %c128] : memref<1x64x256xf32, #tpu.memory_space<vmem>>, vector<1x64x128xf32>
    %13 = vector.shape_cast %12 : vector<1x64x128xf32> to vector<64x128xf32>
    %14 = vector.shape_cast %6 : vector<64x128xf32> to vector<1x64x128xf32>
    tpu.vector_store %arg6[%c0_12, %c0_13, %c128], %14 {strides = array<i32>} : memref<1x64x256xf32, #tpu.memory_space<vmem>>, vector<1x64x128xf32>,
    return
  }
  func.func @transform_0(%arg0: i32, %arg1: i32) -> (i32, i32, i32) {
    %c0_i32 = arith.constant 0 : i32
    %c0_i32_0 = arith.constant 0 : i32
    return %arg0, %arg1, %c0_i32 : i32, i32, i32
  }
  func.func @transform_1(%arg0: i32, %arg1: i32) -> (i32, i32, i32) {
    %c0_i32 = arith.constant 0 : i32
    %c0_i32_0 = arith.constant 0 : i32
    return %arg0, %arg1, %c0_i32 : i32, i32, i32
  }
  func.func @transform_2(%arg0: i32, %arg1: i32) -> (i32, i32) {
    %c0_i32 = arith.constant 0 : i32
    %c0_i32_0 = arith.constant 0 : i32
    %c0_i32_1 = arith.constant 0 : i32
    return %c0_i32, %c0_i32_0 : i32, i32
  }
  func.func @transform_3(%arg0: i32, %arg1: i32) -> (i32, i32) {
    %c0_i32 = arith.constant 0 : i32
    %c0_i32_0 = arith.constant 0 : i32
    %c0_i32_1 = arith.constant 0 : i32
    return %c0_i32, %c0_i32_0 : i32, i32
  }
  func.func @transform_4(%arg0: i32, %arg1: i32) -> (i32, i32, i32) {
    %c0_i32 = arith.constant 0 : i32
    %c0_i32_0 = arith.constant 0 : i32
    return %arg0, %arg1, %c0_i32 : i32, i32, i32
  }
}

</mosaic_0001>

<llo_original>
// kernel: integrator.1
$region0: #{integrator.1}
  #allocation0 [shape = 'u32[]', space=smem, size = 0x4, offset = 0x4, fixed_abs, tag = 'smem constant byte address 0x4 - core index']
  #allocation1 [shape = 'u32[144,128]{1,0:T(1,128)}', space=vmem, size = 0x12000, scoped, tag = 'internal scratch']
  %s0 = inlined_call_operand.hbm [shape: f32[2,64,128], index: 0, kind: input, shape index: {}]
  %s1 = inlined_call_operand.hbm [shape: f32[2,64,256], index: 1, kind: input, shape index: {}]
  %s2 = inlined_call_operand.hbm [shape: f32[256,128], index: 2, kind: input, shape index: {}]
  %s3 = inlined_call_operand.vmem [shape: f32[1,128], index: 3, kind: input, shape index: {}]
  %s4 = inlined_call_operand.hbm [shape: f32[2,64,256], index: 4, kind: output, shape index: {}]
  %s5 = sld [smem:[#allocation0]]
  $region61: #{integrator.1} parent=0
    _
  %s7 = ssub.s32 1, %s5
  %s8 = scalar_select 0, %s7, %s5
  $region1: #{integrator.1} parent=0
    #allocation2 [shape = 'u8[65536]{0}', space=vmem, size = 0x10000, scoped, tag = 'input window, operand 0']
    #allocation3 [shape = 's32[2]{0}', space=sflag, size = 0x8, scoped, tag = 'scoped memory for integrator.1']
    #allocation4 [shape = 's32[2]{0}', space=sflag, size = 0x8, scoped, tag = 'scoped memory for integrator.1']
    #allocation5 [shape = 'u8[131072]{0}', space=vmem, size = 0x20000, scoped, tag = 'input window, operand 1']
    #allocation6 [shape = 's32[2]{0}', space=sflag, size = 0x8, scoped, tag = 'scoped memory for integrator.1']
    #allocation7 [shape = 'u8[131072]{0}', space=vmem, size = 0x20000, scoped, tag = 'input window, operand 2, single buffered']
    #allocation8 [shape = 'u8[131072]{0}', space=vmem, size = 0x20000, scoped, tag = 'output window, operand 0']
    %9 = vsyncpa [#allocation3], 0
    %s10 = scalar_lea.sflag [#allocation3], 1
    %11 = vsyncpa %s10, 0
    %12 = vsyncpa [#allocation6], 0
    %s13 = scalar_lea.sflag [#allocation6], 1
    %14 = vsyncpa %s13, 0
    %15 = vsyncpa [#allocation4], 0
    %s16 = scalar_lea.sflag [#allocation4], 1
    %17 = vsyncpa %s16, 0
    loop: start=0, step=1, limit=4
    $region2: #{integrator.1} parent=1 // loop_pre_header
      _
    $region3: #{integrator.1} parent=1 // loop_header
      %s19 = sphi 0, %s23
      %p20 = scmp.ge.s32.totalorder %s19, 4
      %s26 = sphi 0, %s38
      %s27 = sphi 0, %s34
      %s28 = sphi 0, %s26
      %s29 = sphi 0, %s27
      %s30 = sphi 0, %s28
      %s31 = sphi 0, %s29
      %s43 = sphi 0, %s45
      %s46 = sphi 0, %s43
      %s47 = sphi 0, %s46
      %s63 = sphi 0, %s47
      %s71 = sphi 0, %s73
      %s74 = sphi 0, %s71
      %s75 = sphi 0, %s74
      %s91 = sphi 0, %s75
      %s95 = sphi 0, %s95
      %s97 = sphi 0, %s95
      %s98 = sphi 0, %s97
      %s112 = sphi 0, %s98
      %s116 = sphi 0, %s116
      %s118 = sphi 0, %s116
      %s119 = sphi 0, %s118
      %s133 = sphi 0, %s119
      %s141 = sphi 0, %s143
      %s144 = sphi 0, %s141
      %s145 = sphi 0, %s144
      %s161 = sphi 0, %s145
    $region4: #{integrator.1} parent=1 // loop_header_branch
      %22 = sbr.rel (%p20) target = $region8
    $region5: #{integrator.1} parent=1 // loop_body
      %s24 = ssub.s32 %s19, 1
      %s25 = ssub.s32 %s19, 2
      %s32 = sadd.s32 1, %s27
      %p33 = scmp.ge.s32.totalorder %s32, 1
      %s34 = scalar_select %p33, 0, %s32
      %s35 = sadd.s32 1, %s26
      %s36 = scalar_select %p33, %s35, %s26
      %p37 = scmp.ge.s32.totalorder %s36, 2
      %s38 = scalar_select %p37, 0, %s36
      %s39 = ssub.s32 %s26, %s38
      %s40 = ssub.s32 %s27, %s34
      %s41 = sor.u32 %s39, %s40
      %p42 = scmp.eq.s32.totalorder %s41, 0
      %s44 = sadd.s32 %s43, 1
      %s45 = scalar_select %p42, %s43, %s44
      %p48 = pneg %p42
      %p49 = scmp.eq.s32.totalorder %s19, 1
      %p50 = por %p48, %p49
      %p51 = scmp.ne.s32.totalorder %s43, %s46
      %p52 = scmp.eq.s32.totalorder %s19, 0
      %p53 = por %p51, %p52
      %p54 = scmp.ne.s32.totalorder %s43, %s46
      %p55 = scmp.eq.s32.totalorder %s24, 1
      %p56 = por %p54, %p55
      %p57 = scmp.ne.s32.totalorder %s46, %s47
      %p58 = scmp.eq.s32.totalorder %s24, 0
      %p59 = por %p57, %p58
      %p60 = scmp.ne.s32.totalorder %s46, %s47
      %p61 = scmp.eq.s32.totalorder %s25, 1
      %p62 = por %p60, %p61
      %p64 = scmp.ne.s32.totalorder %s47, %s63
      %p65 = scmp.eq.s32.totalorder %s25, 0
      %p66 = por %p64, %p65
      %s67 = ssub.s32 %s26, %s38
      %s68 = ssub.s32 %s27, %s34
      %s69 = sor.u32 %s67, %s68
      %p70 = scmp.eq.s32.totalorder %s69, 0
      %s72 = sadd.s32 %s71, 1
      %s73 = scalar_select %p70, %s71, %s72
      %p76 = pneg %p70
      %p77 = scmp.eq.s32.totalorder %s19, 1
      %p78 = por %p76, %p77
      %p79 = scmp.ne.s32.totalorder %s71, %s74
      %p80 = scmp.eq.s32.totalorder %s19, 0
      %p81 = por %p79, %p80
      %p82 = scmp.ne.s32.totalorder %s71, %s74
      %p83 = scmp.eq.s32.totalorder %s24, 1
      %p84 = por %p82, %p83
      %p85 = scmp.ne.s32.totalorder %s74, %s75
      %p86 = scmp.eq.s32.totalorder %s24, 0
      %p87 = por %p85, %p86
      %p88 = scmp.ne.s32.totalorder %s74, %s75
      %p89 = scmp.eq.s32.totalorder %s25, 1
      %p90 = por %p88, %p89
      %p92 = scmp.ne.s32.totalorder %s75, %s91
      %p93 = scmp.eq.s32.totalorder %s25, 0
      %p94 = por %p92, %p93
      %s96 = sadd.s32 %s95, 1
      %p99 = scmp.eq.s32.totalorder %s19, 1
      %p100 = scmp.ne.s32.totalorder %s95, %s97
      %p101 = scmp.eq.s32.totalorder %s19, 0
      %p102 = por %p100, %p101
      %p103 = scmp.ne.s32.totalorder %s95, %s97
      %p104 = scmp.eq.s32.totalorder %s24, 1
      %p105 = por %p103, %p104
      %p106 = scmp.ne.s32.totalorder %s97, %s98
      %p107 = scmp.eq.s32.totalorder %s24, 0
      %p108 = por %p106, %p107
      %p109 = scmp.ne.s32.totalorder %s97, %s98
      %p110 = scmp.eq.s32.totalorder %s25, 1
      %p111 = por %p109, %p110
      %p113 = scmp.ne.s32.totalorder %s98, %s112
      %p114 = scmp.eq.s32.totalorder %s25, 0
      %p115 = por %p113, %p114
      %s117 = sadd.s32 %s116, 1
      %p120 = scmp.eq.s32.totalorder %s19, 1
      %p121 = scmp.ne.s32.totalorder %s116, %s118
      %p122 = scmp.eq.s32.totalorder %s19, 0
      %p123 = por %p121, %p122
      %p124 = scmp.ne.s32.totalorder %s116, %s118
      %p125 = scmp.eq.s32.totalorder %s24, 1
      %p126 = por %p124, %p125
      %p127 = scmp.ne.s32.totalorder %s118, %s119
      %p128 = scmp.eq.s32.totalorder %s24, 0
      %p129 = por %p127, %p128
      %p130 = scmp.ne.s32.totalorder %s118, %s119
      %p131 = scmp.eq.s32.totalorder %s25, 1
      %p132 = por %p130, %p131
      %p134 = scmp.ne.s32.totalorder %s119, %s133
      %p135 = scmp.eq.s32.totalorder %s25, 0
      %p136 = por %p134, %p135
      %s137 = ssub.s32 %s26, %s38
      %s138 = ssub.s32 %s27, %s34
      %s139 = sor.u32 %s137, %s138
      %p140 = scmp.eq.s32.totalorder %s139, 0
      %s142 = sadd.s32 %s141, 1
      %s143 = scalar_select %p140, %s141, %s142
      %p146 = pneg %p140
      %p147 = scmp.eq.s32.totalorder %s19, 1
      %p148 = por %p146, %p147
      %p149 = scmp.ne.s32.totalorder %s141, %s144
      %p150 = scmp.eq.s32.totalorder %s19, 0
      %p151 = por %p149, %p150
      %p152 = scmp.ne.s32.totalorder %s141, %s144
      %p153 = scmp.eq.s32.totalorder %s24, 1
      %p154 = por %p152, %p153
      %p155 = scmp.ne.s32.totalorder %s144, %s145
      %p156 = scmp.eq.s32.totalorder %s24, 0
      %p157 = por %p155, %p156
      %p158 = scmp.ne.s32.totalorder %s144, %s145
      %p159 = scmp.eq.s32.totalorder %s25, 1
      %p160 = por %p158, %p159
      %p162 = scmp.ne.s32.totalorder %s145, %s161
      %p163 = scmp.eq.s32.totalorder %s25, 0
      %p164 = por %p162, %p163
      %p165 = scmp.le.s32.totalorder 1, %s19
      %p166 = scmp.lt.s32.totalorder %s19, 3
      %p167 = pnand %p165, %p166
      %p168 = pneg %p167
      // Predicated region
      $region9: #{integrator.1} parent=5 // pred_check
        _
      $region10: #{integrator.1} parent=5 // pred_check_branch
        %170 = sbr.rel (%p167) target = $region12
      $region11: #{integrator.1} parent=5 // pred_region
        %s171 = ssub.s32 %s19, 1
        // Predicated region
        $region13: #{integrator.1} parent=11 // pred_check
          %p172 = pneg %p108
        $region14: #{integrator.1} parent=11 // pred_check_branch
          %174 = sbr.rel (%p172) target = $region16
        $region15: #{integrator.1} parent=11 // pred_region
          %s176 = ssub.s32 4096, 4096
          %177 = vsyncadd [#allocation6], %s176
          %s178 = sshll.u32 [#allocation7], 4
          %s179 = int_to_ptr.vmem [resolvable:$true] %s178
          %184 = dma.hbm_to_vmem [thread:$0]  %s2, 4096, %s179, [#allocation6], 128, 128, 8
        $region16: #{integrator.1} parent=11 // pred_fallthru
          _
        // Predicated region
        $region17: #{integrator.1} parent=11 // pred_check
          %p185 = pneg %p129
        $region18: #{integrator.1} parent=11 // pred_check_branch
          %187 = sbr.rel (%p185) target = $region20
        $region19: #{integrator.1} parent=11 // pred_region
          _
        $region20: #{integrator.1} parent=11 // pred_fallthru
          _
      $region12: #{integrator.1} parent=5 // pred_fallthru
        _
      %p188 = scmp.lt.s32.totalorder %s19, 2
      // Predicated region
      $region21: #{integrator.1} parent=5 // pred_check
        %p189 = pneg %p188
      $region22: #{integrator.1} parent=5 // pred_check_branch
        %191 = sbr.rel (%p189) target = $region24
      $region23: #{integrator.1} parent=5 // pred_region
        // Predicated region
        $region25: #{integrator.1} parent=23 // pred_check
          %p192 = pneg %p53
        $region26: #{integrator.1} parent=23 // pred_check_branch
          %194 = sbr.rel (%p192) target = $region28
        $region27: #{integrator.1} parent=23 // pred_region
          %s195 = sand.u32 %s43, 1
          %s196 = scalar_lea.sflag [#allocation3], %s195
          %s197 = sand.u32 %s43, 1
          %s198 = smul.addr %s197, 64
          %s199 = scalar_lea.vmem [#allocation2], %s198
          %s200 = smul.u32 8, %s27
          %s202 = ssub.s32 1024, 1024
          %203 = vsyncadd %s196, %s202
          %s204 = smul.addr %s26, 8
          %s205 = sadd.s32 %s200, %s204
          %s206 = smul.addr %s205, 128
          %s207 = scalar_lea.hbm %s0, %s206
          %s208 = sshll.u32 %s199, 4
          %s209 = int_to_ptr.vmem [resolvable:$true] %s208
          %214 = dma.hbm_to_vmem [thread:$0]  %s207, 1024, %s209, %s196, 128, 128, 8
        $region28: #{integrator.1} parent=23 // pred_fallthru
          _
        // Predicated region
        $region29: #{integrator.1} parent=23 // pred_check
          %p215 = pneg %p81
        $region30: #{integrator.1} parent=23 // pred_check_branch
          %217 = sbr.rel (%p215) target = $region32
        $region31: #{integrator.1} parent=23 // pred_region
          %s218 = sand.u32 %s19, 1
          %s219 = scalar_lea.sflag [#allocation6], %s218
          %s220 = sand.u32 %s71, 1
          %s221 = smul.addr %s220, 128
          %s222 = scalar_lea.vmem [#allocation5], %s221
          %s223 = smul.u32 8, %s27
          %s225 = ssub.s32 2048, 2048
          %226 = vsyncadd %s219, %s225
          %s227 = smul.addr %s223, 2
          %s228 = smul.addr %s26, 16
          %s229 = sadd.s32 %s227, %s228
          %s230 = smul.addr %s229, 128
          %s231 = scalar_lea.hbm %s1, %s230
          %s232 = sshll.u32 %s222, 4
          %s233 = int_to_ptr.vmem [resolvable:$true] %s232
          %238 = dma.hbm_to_vmem [thread:$0]  %s231, 2048, %s233, %s219, 256, 256, 16
        $region32: #{integrator.1} parent=23 // pred_fallthru
          _
      $region24: #{integrator.1} parent=5 // pred_fallthru
        _
      %p239 = scmp.le.s32.totalorder 1, %s19
      %p240 = scmp.lt.s32.totalorder %s19, 3
      %p241 = pnand %p239, %p240
      %p242 = pneg %p241
      // Predicated region
      $region33: #{integrator.1} parent=5 // pred_check
        _
      $region34: #{integrator.1} parent=5 // pred_check_branch
        %244 = sbr.rel (%p241) target = $region36
      $region35: #{integrator.1} parent=5 // pred_region
        %s245 = ssub.s32 %s19, 1
        %s246 = sand.u32 %s46, 1
        %s247 = scalar_lea.sflag [#allocation3], %s246
        %s248 = sand.u32 %s46, 1
        %s249 = smul.addr %s248, 64
        %s250 = scalar_lea.vmem [#allocation2], %s249
        // Predicated region
        $region37: #{integrator.1} parent=35 // pred_check
          %p251 = pneg %p59
        $region38: #{integrator.1} parent=35 // pred_check_branch
          %253 = sbr.rel (%p251) target = $region40
        $region39: #{integrator.1} parent=35 // pred_region
          %254 = dma.done %s247, 1024
        $region40: #{integrator.1} parent=35 // pred_fallthru
          _
        %s255 = sand.u32 %s24, 1
        %s256 = scalar_lea.sflag [#allocation6], %s255
        %s257 = sand.u32 %s74, 1
        %s258 = smul.addr %s257, 128
        %s259 = scalar_lea.vmem [#allocation5], %s258
        // Predicated region
        $region41: #{integrator.1} parent=35 // pred_check
          %p260 = pneg %p87
        $region42: #{integrator.1} parent=35 // pred_check_branch
          %262 = sbr.rel (%p260) target = $region44
        $region43: #{integrator.1} parent=35 // pred_region
          %263 = dma.done %s256, 2048
        $region44: #{integrator.1} parent=35 // pred_fallthru
          _
        // Predicated region
        $region45: #{integrator.1} parent=35 // pred_check
          %p264 = pneg %p108
        $region46: #{integrator.1} parent=35 // pred_check_branch
          %266 = sbr.rel (%p264) target = $region48
        $region47: #{integrator.1} parent=35 // pred_region
          %267 = dma.done [#allocation6], 4096
        $region48: #{integrator.1} parent=35 // pred_fallthru
          _
        %s268 = sand.u32 %s46, 1
        %s269 = scalar_lea.sflag [#allocation3], %s268
        %s270 = sand.u32 %s46, 1
        %s271 = smul.addr %s270, 64
        %s272 = scalar_lea.vmem [#allocation2], %s271
        %p273 = pneg %p59
        %p274 = pneg %p56
        %s275 = sand.u32 %s24, 1
        %s276 = scalar_lea.sflag [#allocation6], %s275
        %s277 = sand.u32 %s74, 1
        %s278 = smul.addr %s277, 128
        %s279 = scalar_lea.vmem [#allocation5], %s278
        %p280 = pneg %p87
        %p281 = pneg %p84
        %p282 = pneg %p108
        %p283 = pneg %p105
        %p284 = pneg %p129
        %p285 = pneg %p126
        %p286 = pneg %p157
        %p287 = pneg %p154
        %s288 = sand.u32 %s144, 1
        %s289 = scalar_lea.sflag [#allocation4], %s288
        %s290 = sand.u32 %s144, 1
        %s291 = smul.addr %s290, 128
        %s292 = scalar_lea.vmem [#allocation8], %s291
        %s293 = smul.u32 8, %s29
        %s294 = smul.u32 8, %s29
        %s295 = smul.u32 8, %s29
        %v296 = vld [vmem:[%s259] sm:$0xff]
        %v297 = vld [vmem:[%s259 + $0x8] sm:$0xff]
        %v298 = vld [vmem:[%s259 + $0x10] sm:$0xff]
        %v299 = vld [vmem:[%s259 + $0x18] sm:$0xff]
        %v300 = vld [vmem:[%s259 + $0x20] sm:$0xff]
        %v301 = vld [vmem:[%s259 + $0x28] sm:$0xff]
        %v302 = vld [vmem:[%s259 + $0x30] sm:$0xff]
        %v303 = vld [vmem:[%s259 + $0x38] sm:$0xff]
        %v304 = vld [vmem:[%s259 + $0x40] sm:$0xff]
        %v305 = vld [vmem:[%s259 + $0x48] sm:$0xff]
        %v306 = vld [vmem:[%s259 + $0x50] sm:$0xff]
        %v307 = vld [vmem:[%s259 + $0x58] sm:$0xff]
        %v308 = vld [vmem:[%s259 + $0x60] sm:$0xff]
        %v309 = vld [vmem:[%s259 + $0x68] sm:$0xff]
        %v310 = vld [vmem:[%s259 + $0x70] sm:$0xff]
        %v311 = vld [vmem:[%s259 + $0x78] sm:$0xff]
        %v312 = vld [vmem:[#allocation7] sm:$0xff]
        %v313 = vld [vmem:[#allocation7 + $0x8] sm:$0xff]
        %v314 = vld [vmem:[#allocation7 + $0x10] sm:$0xff]
        %v315 = vld [vmem:[#allocation7 + $0x18] sm:$0xff]
        %v316 = vld [vmem:[#allocation7 + $0x20] sm:$0xff]
        %v317 = vld [vmem:[#allocation7 + $0x28] sm:$0xff]
        %v318 = vld [vmem:[#allocation7 + $0x30] sm:$0xff]
        %v319 = vld [vmem:[#allocation7 + $0x38] sm:$0xff]
        %v320 = vld [vmem:[#allocation7 + $0x40] sm:$0xff]
        %v321 = vld [vmem:[#allocation7 + $0x48] sm:$0xff]
        %v322 = vld [vmem:[#allocation7 + $0x50] sm:$0xff]
        %v323 = vld [vmem:[#allocation7 + $0x58] sm:$0xff]
        %v324 = vld [vmem:[#allocation7 + $0x60] sm:$0xff]
        %v325 = vld [vmem:[#allocation7 + $0x68] sm:$0xff]
        %v326 = vld [vmem:[#allocation7 + $0x70] sm:$0xff]
        %v327 = vld [vmem:[#allocation7 + $0x78] sm:$0xff]
        %v328 = vld [vmem:[#allocation7 + $0x80] sm:$0xff]
        %v329 = vld [vmem:[#allocation7 + $0x88] sm:$0xff]
        %v330 = vld [vmem:[#allocation7 + $0x90] sm:$0xff]
        %v331 = vld [vmem:[#allocation7 + $0x98] sm:$0xff]
        %v332 = vld [vmem:[#allocation7 + $0xa0] sm:$0xff]
        %v333 = vld [vmem:[#allocation7 + $0xa8] sm:$0xff]
        %v334 = vld [vmem:[#allocation7 + $0xb0] sm:$0xff]
        %v335 = vld [vmem:[#allocation7 + $0xb8] sm:$0xff]
        %v336 = vld [vmem:[#allocation7 + $0xc0] sm:$0xff]
        %v337 = vld [vmem:[#allocation7 + $0xc8] sm:$0xff]
        %v338 = vld [vmem:[#allocation7 + $0xd0] sm:$0xff]
        %v339 = vld [vmem:[#allocation7 + $0xd8] sm:$0xff]
        %v340 = vld [vmem:[#allocation7 + $0xe0] sm:$0xff]
        %v341 = vld [vmem:[#allocation7 + $0xe8] sm:$0xff]
        %v342 = vld [vmem:[#allocation7 + $0xf0] sm:$0xff]
        %v343 = vld [vmem:[#allocation7 + $0xf8] sm:$0xff]
        %v344 = vld [vmem:[%s3] sm:$0x1]
        %v346 = vlaneseq
        %v347 = vshrl.u32 %v346, 7
        %v348 = vsub.s32 0, %v347
        %v349 = vrot.slane %v344, %v348
        %351 = vmatprep.subr.mxu0 0.0
        %352 = vmatpush1.msra.mxu0 %v312
        %353 = vmatprep.subr.mxu0 0.0
        %354 = vmatpush1.msra.mxu0 %v313
        %355 = vmatprep.subr.mxu0 0.0
        %356 = vmatpush1.msra.mxu0 %v314
        %357 = vmatprep.subr.mxu0 0.0
        %358 = vmatpush1.msra.mxu0 %v315
        %359 = vmatprep.subr.mxu0 0.0
        %360 = vmatpush1.msra.mxu0 %v316
        %361 = vmatprep.subr.mxu0 0.0
        %362 = vmatpush1.msra.mxu0 %v317
        %363 = vmatprep.subr.mxu0 0.0
        %364 = vmatpush1.msra.mxu0 %v318
        %365 = vmatprep.subr.mxu0 0.0
        %366 = vmatpush1.msra.mxu0 %v319
        %367 = vmatprep.subr.mxu0 0.0
        %368 = vmatpush1.msra.mxu0 %v320
        %369 = vmatprep.subr.mxu0 0.0
        %370 = vmatpush1.msra.mxu0 %v321
        %371 = vmatprep.subr.mxu0 0.0
        %372 = vmatpush1.msra.mxu0 %v322
        %373 = vmatprep.subr.mxu0 0.0
        %374 = vmatpush1.msra.mxu0 %v323
        %375 = vmatprep.subr.mxu0 0.0
        %376 = vmatpush1.msra.mxu0 %v324
        %377 = vmatprep.subr.mxu0 0.0
        %378 = vmatpush1.msra.mxu0 %v325
        %379 = vmatprep.subr.mxu0 0.0
        %380 = vmatpush1.msra.mxu0 %v326
        %381 = vmatprep.subr.mxu0 0.0
        %382 = vmatpush1.msra.mxu0 %v327
        %383 = vmatprep.subr.mxu0 0.0
        %384 = vmatpush1.msra.mxu0 %v328
        %385 = vmatprep.subr.mxu0 0.0
        %386 = vmatpush1.msra.mxu0 %v329
        %387 = vmatprep.subr.mxu0 0.0
        %388 = vmatpush1.msra.mxu0 %v330
        %389 = vmatprep.subr.mxu0 0.0
        %390 = vmatpush1.msra.mxu0 %v331
        %391 = vmatprep.subr.mxu0 0.0
        %392 = vmatpush1.msra.mxu0 %v332
        %393 = vmatprep.subr.mxu0 0.0
        %394 = vmatpush1.msra.mxu0 %v333
        %395 = vmatprep.subr.mxu0 0.0
        %396 = vmatpush1.msra.mxu0 %v334
        %397 = vmatprep.subr.mxu0 0.0
        %398 = vmatpush1.msra.mxu0 %v335
        %399 = vmatprep.subr.mxu0 0.0
        %400 = vmatpush1.msra.mxu0 %v336
        %401 = vmatprep.subr.mxu0 0.0
        %402 = vmatpush1.msra.mxu0 %v337
        %403 = vmatprep.subr.mxu0 0.0
        %404 = vmatpush1.msra.mxu0 %v338
        %405 = vmatprep.subr.mxu0 0.0
        %406 = vmatpush1.msra.mxu0 %v339
        %407 = vmatprep.subr.mxu0 0.0
        %408 = vmatpush1.msra.mxu0 %v340
        %409 = vmatprep.subr.mxu0 0.0
        %410 = vmatpush1.msra.mxu0 %v341
        %411 = vmatprep.subr.mxu0 0.0
        %412 = vmatpush1.msra.mxu0 %v342
        %413 = vmatprep.subr.mxu0 0.0
        %414 = vmatpush1.msra.mxu0 %v343
        %415 = vmatprep.mubr.f32.mxu0 %v297
        %416 = vmatmul.mubr.f32.gmra.mrb[0].mxu0 %v296
        %v417 = vpop.f32.mrb[0].mxu0
        %v418 = vadd.f32 %v349, %v417
        %v419 = vpop.f32.mrb[0].mxu0
        %420 = vmatprep.mubr.f32.mxu0 %v299
        %421 = vmatmul.mubr.f32.gmra.mrb[0].mxu0 %v298
        %v422 = vpop.f32.mrb[0].mxu0
        %v423 = vadd.f32 %v349, %v422
        %v424 = vpop.f32.mrb[0].mxu0
        %425 = vmatprep.mubr.f32.mxu0 %v301
        %426 = vmatmul.mubr.f32.gmra.mrb[0].mxu0 %v300
        %v427 = vpop.f32.mrb[0].mxu0
        %v428 = vadd.f32 %v349, %v427
        %v429 = vpop.f32.mrb[0].mxu0
        %430 = vmatprep.mubr.f32.mxu0 %v303
        %431 = vmatmul.mubr.f32.gmra.mrb[0].mxu0 %v302
        %v432 = vpop.f32.mrb[0].mxu0
        %v433 = vadd.f32 %v349, %v432
        %v434 = vpop.f32.mrb[0].mxu0
        %435 = vmatprep.mubr.f32.mxu0 %v305
        %436 = vmatmul.mubr.f32.gmra.mrb[0].mxu0 %v304
        %v437 = vpop.f32.mrb[0].mxu0
        %v438 = vadd.f32 %v349, %v437
        %v439 = vpop.f32.mrb[0].mxu0
        %440 = vmatprep.mubr.f32.mxu0 %v307
        %441 = vmatmul.mubr.f32.gmra.mrb[0].mxu0 %v306
        %v442 = vpop.f32.mrb[0].mxu0
        %v443 = vadd.f32 %v349, %v442
        %v444 = vpop.f32.mrb[0].mxu0
        %445 = vmatprep.mubr.f32.mxu0 %v309
        %446 = vmatmul.mubr.f32.gmra.mrb[0].mxu0 %v308
        %v447 = vpop.f32.mrb[0].mxu0
        %v448 = vadd.f32 %v349, %v447
        %v449 = vpop.f32.mrb[0].mxu0
        %450 = vmatprep.mubr.f32.mxu0 %v311
        %451 = vmatmul.mubr.f32.gmra.mrb[0].mxu0 %v310
        %v452 = vpop.f32.mrb[0].mxu0
        %v453 = vadd.f32 %v349, %v452
        %v454 = vpop.f32.mrb[0].mxu0
        %455 = vdwg.mxu0
        %v456 = vld [vmem:[%s250] sm:$0xff]
        %v457 = vld [vmem:[%s250 + $0x8] sm:$0xff]
        %v458 = vld [vmem:[%s250 + $0x10] sm:$0xff]
        %v459 = vld [vmem:[%s250 + $0x18] sm:$0xff]
        %v460 = vld [vmem:[%s250 + $0x20] sm:$0xff]
        %v461 = vld [vmem:[%s250 + $0x28] sm:$0xff]
        %v462 = vld [vmem:[%s250 + $0x30] sm:$0xff]
        %v463 = vld [vmem:[%s250 + $0x38] sm:$0xff]
        %464 = vst [vmem:[%s292] sm:$0xff] %v456
        %465 = vst [vmem:[%s292 + $0x10] sm:$0xff] %v457
        %466 = vst [vmem:[%s292 + $0x20] sm:$0xff] %v458
        %467 = vst [vmem:[%s292 + $0x30] sm:$0xff] %v459
        %468 = vst [vmem:[%s292 + $0x40] sm:$0xff] %v460
        %469 = vst [vmem:[%s292 + $0x50] sm:$0xff] %v461
        %470 = vst [vmem:[%s292 + $0x60] sm:$0xff] %v462
        %471 = vst [vmem:[%s292 + $0x70] sm:$0xff] %v463
        %472 = vst [vmem:[%s292 + $0x8] sm:$0xff] %v418
        %473 = vst [vmem:[%s292 + $0x18] sm:$0xff] %v423
        %474 = vst [vmem:[%s292 + $0x28] sm:$0xff] %v428
        %475 = vst [vmem:[%s292 + $0x38] sm:$0xff] %v433
        %476 = vst [vmem:[%s292 + $0x48] sm:$0xff] %v438
        %477 = vst [vmem:[%s292 + $0x58] sm:$0xff] %v443
        %478 = vst [vmem:[%s292 + $0x68] sm:$0xff] %v448
        %479 = vst [vmem:[%s292 + $0x78] sm:$0xff] %v453
        %s480 = sand.u32 %s144, 1
        %s481 = scalar_lea.sflag [#allocation4], %s480
        %s482 = sand.u32 %s144, 1
        %s483 = smul.addr %s482, 128
        %s484 = scalar_lea.vmem [#allocation8], %s483
        // Predicated region
        $region49: #{integrator.1} parent=35 // pred_check
          %p485 = pneg %p154
        $region50: #{integrator.1} parent=35 // pred_check_branch
          %487 = sbr.rel (%p485) target = $region52
        $region51: #{integrator.1} parent=35 // pred_region
          %s488 = smul.u32 8, %s29
          %s490 = ssub.s32 2048, 2048
          %491 = vsyncadd %s481, %s490
          %s492 = smul.addr %s488, 2
          %s493 = smul.addr %s28, 16
          %s494 = sadd.s32 %s492, %s493
          %s495 = smul.addr %s494, 128
          %s496 = scalar_lea.hbm %s4, %s495
          %s497 = sshll.u32 %s484, 4
          %s498 = int_to_ptr.vmem [resolvable:$true] %s497
          %503 = dma.vmem_to_hbm [thread:$0]  %s498, 2048, %s496, %s481, 256, 256, 16
        $region52: #{integrator.1} parent=35 // pred_fallthru
          _
      $region36: #{integrator.1} parent=5 // pred_fallthru
        _
      %p504 = scmp.le.s32.totalorder 2, %s19
      // Predicated region
      $region53: #{integrator.1} parent=5 // pred_check
        %p505 = pneg %p504
      $region54: #{integrator.1} parent=5 // pred_check_branch
        %507 = sbr.rel (%p505) target = $region56
      $region55: #{integrator.1} parent=5 // pred_region
        %s508 = ssub.s32 %s19, 2
        // Predicated region
        $region57: #{integrator.1} parent=55 // pred_check
          %p509 = pneg %p160
        $region58: #{integrator.1} parent=55 // pred_check_branch
          %511 = sbr.rel (%p509) target = $region60
        $region59: #{integrator.1} parent=55 // pred_region
          %s512 = sand.u32 %s145, 1
          %s513 = scalar_lea.sflag [#allocation4], %s512
          %s514 = sand.u32 %s145, 1
          %s515 = smul.addr %s514, 128
          %s516 = scalar_lea.vmem [#allocation8], %s515
          %517 = dma.done %s513, 2048
        $region60: #{integrator.1} parent=55 // pred_fallthru
          _
      $region56: #{integrator.1} parent=5 // pred_fallthru
        _
    $region6: #{integrator.1} parent=1 // loop_footer
      %s23 = sadd.s32 1, %s19
    $region7: #{integrator.1} parent=1 // loop_footer_branch
      %18 = sbr.rel target = $region3
    $region8: #{integrator.1} parent=1 // loop_exit
      _
    %518 = vsyncpa [#allocation3], 1
    %s519 = scalar_lea.sflag [#allocation3], 1
    %520 = vsyncpa %s519, 1
    %521 = vsyncpa [#allocation6], 1
    %s522 = scalar_lea.sflag [#allocation6], 1
    %523 = vsyncpa %s522, 1
    %524 = vsyncpa [#allocation4], 1
    %s525 = scalar_lea.sflag [#allocation4], 1
    %526 = vsyncpa %s525, 1

</llo_original>
